<compile_context>
chip_gen: v6e
topology: v6e:2x2x1
jax: 0.10.0
libtpu: 0.0.40
codegen_flags: <defaults>
</compile_context>

<pallas_src>
import functools

import jax
import jax.numpy as jnp
from jax.experimental import pallas as pl
from jax.experimental.pallas import tpu as pltpu

# ----------------------------- configuration -------------------------------
FEATURE_SIZE = 128     # Encoder.feature_size (output of replaced fc)
ENC_DROPOUT = 0.1      # Encoder.dropout
IN_FEATURES = 32       # backbone fc in_features (2048 in real inception_v3)
C_IN = 3               # RGB input channels
H = W = 16             # small spatial size  -> H*W = 256 (2 full lane groups)
N = 2                  # batch


# ------------------------------ Pallas kernel ------------------------------
def _encoder_kernel(x_ref, wc_ref, bc_ref, wf_ref, bf_ref, rand_ref, o_ref,
                    *, dropout_p, training):
    """Backbone (1x1 conv -> ReLU -> GAP -> fc) + Encoder ([0], ReLU, dropout).

    Ref shapes (batch row 0 only):
      x_ref    : (C_IN, H*W)          f32   image row 0, HW on lane axis
      wc_ref   : (IN_FEATURES, C_IN)  f32   1x1 conv weight
      bc_ref   : (IN_FEATURES, 1)     f32   1x1 conv bias
      wf_ref   : (IN_FEATURES, F)     f32   fc weight (pre-transposed vs torch)
      bf_ref   : (1, F)               f32   fc bias
      rand_ref : (1, F)               f32   uniforms in [0,1) for dropout
      o_ref    : (1, F)               f32   output (== Encoder(x) for row 0)
    """
    x = x_ref[...]                                             # (Cin, HW)
    wc = wc_ref[...]                                           # (Cf, Cin)

    # 1x1 conv as C_IN broadcast FMAs on the VPU (K=3 would waste the MXU).
    feat = wc[:, 0:1] * x[0:1, :]                              # (Cf, HW)
    for c in range(1, C_IN):
        feat = feat + wc[:, c:c + 1] * x[c:c + 1, :]
    feat = jnp.maximum(feat + bc_ref[...], 0.0)                # bias + ReLU

    # Global average pool over spatial positions (lane-axis reduce).
    pooled = jnp.mean(feat, axis=1, keepdims=True)             # (Cf, 1)

    # Replaced fc: Linear(in_features -> feature_size) as VPU broadcast-mul
    # + sublane reduce (M=1, K=32 would waste the MXU).
    logits = jnp.sum(pooled * wf_ref[...], axis=0, keepdims=True)  # (1, F)
    logits = logits + bf_ref[...]

    # forward(): out = feats(x)[0]  (already row 0);  out = ReLU(out)
    out = jnp.maximum(logits, 0.0)

    # out = Dropout(out)   (train-mode inverted dropout; disabled in eval)
    if training and dropout_p > 0.0:
        keep = rand_ref[...] >= jnp.float32(dropout_p)
        out = jnp.where(keep, out * (1.0 / (1.0 - dropout_p)),
                        jnp.zeros_like(out))

    o_ref[...] = out.astype(o_ref.dtype)                       # lane-dense vst


# ------------------------------ host wrapper -------------------------------
def encoder_forward(x_nchw, params, *, dropout_p=ENC_DROPOUT, training=True,
                    seed=0):
    """x_nchw: (N, C, H, W) float32 -> (feature_size,) float32 (row 0)."""
    n, c, h, w = x_nchw.shape
    del n
    # `[0]` commutes with the per-row backbone: slice batch row 0 up front and
    # keep NCHW order -> (C, H*W), pure reshape, HW on the lane axis.
    x0 = x_nchw[0].reshape(c, h * w)

    wc, bc, wf, bf = params
    # Host-generated uniforms for dropout (portable; applied inside kernel).
    rand = jax.random.uniform(jax.random.PRNGKey(seed), (1, FEATURE_SIZE),
                              dtype=jnp.float32)

    kernel = functools.partial(_encoder_kernel, dropout_p=dropout_p,
                               training=training)
    vmem = pl.BlockSpec(memory_space=pltpu.MemorySpace.VMEM)
    out = pl.pallas_call(
        kernel,
        out_shape=jax.ShapeDtypeStruct((1, FEATURE_SIZE), jnp.float32),
        in_specs=[vmem, vmem, vmem, vmem, vmem, vmem],
        out_specs=vmem,
    )(x0, wc, bc, wf, bf, rand)
    return out.reshape(FEATURE_SIZE)                           # free reshape


def init_params(key):
    k1, k2, k3, k4 = jax.random.split(key, 4)
    # conv weight stored (out_channels, in_channels) like a squeezed 1x1 conv.
    wc = jax.random.normal(k1, (IN_FEATURES, C_IN), jnp.float32) * 0.1
    bc = jax.random.normal(k2, (IN_FEATURES, 1), jnp.float32) * 0.01
    # torch nn.Linear stores (out, in); keep it pre-transposed as (in, out).
    wf = jax.random.normal(k3, (IN_FEATURES, FEATURE_SIZE), jnp.float32) * 0.1
    bf = jax.random.normal(k4, (1, FEATURE_SIZE), jnp.float32) * 0.01
    return wc, bc, wf, bf


# ---------------------------------- main -----------------------------------
if __name__ == "__main__":
    key = jax.random.PRNGKey(0)
    k_x, k_p = jax.random.split(key)
    x = jax.random.normal(k_x, (N, C_IN, H, W), jnp.float32)   # NCHW like torch
    params = init_params(k_p)

    out = encoder_forward(x, params, dropout_p=ENC_DROPOUT, training=True,
                          seed=0)
    out = jax.block_until_ready(out)

    assert out.shape == (FEATURE_SIZE,), out.shape
    assert bool(jnp.all(jnp.isfinite(out)))
    assert bool(jnp.all(out >= 0.0))   # ReLU + dropout keep-or-zero => nonneg

    # eval-mode path (dropout disabled) should also run clean.
    out_eval = jax.block_until_ready(
        encoder_forward(x, params, dropout_p=ENC_DROPOUT, training=False))
    assert out_eval.shape == (FEATURE_SIZE,)
    assert bool(jnp.all(jnp.isfinite(out_eval)))

    print("KERNEL_OK")
</pallas_src>

<mosaic_0001>
module attributes {stable_mosaic.version = 11 : i64} {
  func.func @_encoder_kernel(%arg0: memref<3x256xf32, #tpu.memory_space<vmem>>, %arg1: memref<32x3xf32, #tpu.memory_space<vmem>>, %arg2: memref<32x1xf32, #tpu.memory_space<vmem>>, %arg3: memref<32x128xf32, #tpu.memory_space<vmem>>, %arg4: memref<1x128xf32, #tpu.memory_space<vmem>>, %arg5: memref<1x128xf32, #tpu.memory_space<vmem>>, %arg6: memref<1x128xf32, #tpu.memory_space<vmem>>) attributes {dimension_semantics = [], scalar_prefetch = 0 : i64, scratch_operands = 0 : i64, tpu.core_type = #tpu.core_type<tc>} {
    %c0 = arith.constant 0 : index
    %c0_0 = arith.constant 0 : index
    %0 = vector.load %arg0[%c0, %c0_0] : memref<3x256xf32, #tpu.memory_space<vmem>>, vector<3x256xf32>
    %c0_1 = arith.constant 0 : index
    %c0_2 = arith.constant 0 : index
    %1 = vector.load %arg1[%c0_1, %c0_2] : memref<32x3xf32, #tpu.memory_space<vmem>>, vector<32x3xf32>
    %2 = vector.extract_strided_slice %1 {offsets = [0, 0], sizes = [32, 1], strides = [1, 1]} : vector<32x3xf32> to vector<32x1xf32>
    %3 = vector.extract_strided_slice %0 {offsets = [0, 0], sizes = [1, 256], strides = [1, 1]} : vector<3x256xf32> to vector<1x256xf32>
    %4 = vector.broadcast %2 : vector<32x1xf32> to vector<32x256xf32>
    %5 = vector.broadcast %3 : vector<1x256xf32> to vector<32x256xf32>
    %6 = arith.mulf %4, %5 : vector<32x256xf32>
    %7 = vector.extract_strided_slice %1 {offsets = [0, 1], sizes = [32, 1], strides = [1, 1]} : vector<32x3xf32> to vector<32x1xf32>
    %8 = vector.extract_strided_slice %0 {offsets = [1, 0], sizes = [1, 256], strides = [1, 1]} : vector<3x256xf32> to vector<1x256xf32>
    %9 = vector.broadcast %7 : vector<32x1xf32> to vector<32x256xf32>
    %10 = vector.broadcast %8 : vector<1x256xf32> to vector<32x256xf32>
    %11 = arith.mulf %9, %10 : vector<32x256xf32>
    %12 = arith.addf %6, %11 : vector<32x256xf32>
    %13 = vector.extract_strided_slice %1 {offsets = [0, 2], sizes = [32, 1], strides = [1, 1]} : vector<32x3xf32> to vector<32x1xf32>
    %14 = vector.extract_strided_slice %0 {offsets = [2, 0], sizes = [1, 256], strides = [1, 1]} : vector<3x256xf32> to vector<1x256xf32>
    %15 = vector.broadcast %13 : vector<32x1xf32> to vector<32x256xf32>
    %16 = vector.broadcast %14 : vector<1x256xf32> to vector<32x256xf32>
    %17 = arith.mulf %15, %16 : vector<32x256xf32>
    %18 = arith.addf %12, %17 : vector<32x256xf32>
    %c0_3 = arith.constant 0 : index
    %c0_4 = arith.constant 0 : index
    %19 = vector.load %arg2[%c0_3, %c0_4] : memref<32x1xf32, #tpu.memory_space<vmem>>, vector<32x1xf32>
    %20 = vector.broadcast %19 : vector<32x1xf32> to vector<32x256xf32>
    %21 = arith.addf %18, %20 : vector<32x256xf32>
    %cst = arith.constant 0.000000e+00 : f32
    %22 = vector.broadcast %cst : f32 to vector<32x256xf32>
    %23 = arith.maximumf %21, %22 : vector<32x256xf32>
    %cst_5 = arith.constant dense<0.000000e+00> : vector<32xf32>
    %24 = vector.multi_reduction <add>, %23, %cst_5 [1] : vector<32x256xf32> to vector<32xf32>
    %25 = vector.shape_cast %24 : vector<32xf32> to vector<32x1xf32>
    %cst_6 = arith.constant 2.560000e+02 : f32
    %26 = vector.broadcast %cst_6 : f32 to vector<32x1xf32>
    %27 = arith.divf %25, %26 : vector<32x1xf32>
    %c0_7 = arith.constant 0 : index
    %c0_8 = arith.constant 0 : index
    %28 = vector.load %arg3[%c0_7, %c0_8] : memref<32x128xf32, #tpu.memory_space<vmem>>, vector<32x128xf32>
    %29 = vector.broadcast %27 : vector<32x1xf32> to vector<32x128xf32>
    %30 = arith.mulf %29, %28 : vector<32x128xf32>
    %cst_9 = arith.constant dense<0.000000e+00> : vector<128xf32>
    %31 = vector.multi_reduction <add>, %30, %cst_9 [0] : vector<32x128xf32> to vector<128xf32>
    %32 = vector.shape_cast %31 : vector<128xf32> to vector<1x128xf32>
    %c0_10 = arith.constant 0 : index
    %c0_11 = arith.constant 0 : index
    %33 = vector.load %arg4[%c0_10, %c0_11] : memref<1x128xf32, #tpu.memory_space<vmem>>, vector<1x128xf32>
    %34 = arith.addf %32, %33 : vector<1x128xf32>
    %cst_12 = arith.constant 0.000000e+00 : f32
    %35 = vector.broadcast %cst_12 : f32 to vector<1x128xf32>
    %36 = arith.maximumf %34, %35 : vector<1x128xf32>
    %c0_13 = arith.constant 0 : index
    %c0_14 = arith.constant 0 : index
    %37 = vector.load %arg5[%c0_13, %c0_14] : memref<1x128xf32, #tpu.memory_space<vmem>>, vector<1x128xf32>
    %cst_15 = arith.constant 1.000000e-01 : f32
    %38 = vector.broadcast %cst_15 : f32 to vector<1x128xf32>
    %39 = arith.cmpf oge, %37, %38 : vector<1x128xf32>
    %cst_16 = arith.constant 1.11111116 : f32
    %40 = vector.broadcast %cst_16 : f32 to vector<1x128xf32>
    %41 = arith.mulf %36, %40 : vector<1x128xf32>
    %cst_17 = arith.constant 0.000000e+00 : f32
    %42 = vector.broadcast %cst_17 : f32 to vector<1x128xf32>
    %43 = arith.select %39, %41, %42 : vector<1x128xi1>, vector<1x128xf32>
    %c0_18 = arith.constant 0 : index
    %c0_19 = arith.constant 0 : index
    %44 = vector.load %arg6[%c0_18, %c0_19] : memref<1x128xf32, #tpu.memory_space<vmem>>, vector<1x128xf32>
    tpu.vector_store %arg6[%c0_18, %c0_19], %43 {strides = array<i32>} : memref<1x128xf32, #tpu.memory_space<vmem>>, vector<1x128xf32>,
    return
  }
}

</mosaic_0001>

<llo_original>
// kernel: tpu_custom_call.1
$region0: #{tpu_custom_call.1}
  #allocation0 [shape = 'u32[]', space=smem, size = 0x4, offset = 0x4, fixed_abs, tag = 'smem constant byte address 0x4 - core index']
  #allocation1 [shape = 'u32[144,128]{1,0:T(1,128)}', space=vmem, size = 0x12000, scoped, tag = 'internal scratch']
  %s0 = inlined_call_operand.vmem [shape: f32[3,256], index: 0, kind: input, shape index: {}]
  %s1 = inlined_call_operand.vmem [shape: f32[32,3], index: 1, kind: input, shape index: {}]
  %s2 = inlined_call_operand.vmem [shape: f32[32,1], index: 2, kind: input, shape index: {}]
  %s3 = inlined_call_operand.vmem [shape: f32[32,128], index: 3, kind: input, shape index: {}]
  %s4 = inlined_call_operand.vmem [shape: f32[1,128], index: 4, kind: input, shape index: {}]
  %s5 = inlined_call_operand.vmem [shape: f32[1,128], index: 5, kind: input, shape index: {}]
  %s6 = inlined_call_operand.hbm [shape: f32[1,128], index: 6, kind: output, shape index: {}]
  %s7 = sld [smem:[#allocation0]]
  $region34: #{tpu_custom_call.1} parent=0
    _
  %s9 = ssub.s32 1, %s7
  %s10 = scalar_select 0, %s9, %s7
  $region1: #{tpu_custom_call.1} parent=0
    #allocation2 [shape = 'u8[512]{0}', space=vmem, size = 0x400, scoped, tag = 'output window, operand 0, single buffered']
    #allocation3 [shape = 's32[1]{0}', space=sflag, size = 0x4, scoped, tag = 'scoped memory for tpu_custom_call.1']
    %11 = vsyncpa [#allocation3], 0
    // Predicated region
    $region2: #{tpu_custom_call.1} parent=1 // pred_check
      _
    $region3: #{tpu_custom_call.1} parent=1 // pred_check_branch
      %13 = sbr.rel (0) target = $region5
    $region4: #{tpu_custom_call.1} parent=1 // pred_region
      _
    $region5: #{tpu_custom_call.1} parent=1 // pred_fallthru
      _
    // Predicated region
    $region6: #{tpu_custom_call.1} parent=1 // pred_check
      _
    $region7: #{tpu_custom_call.1} parent=1 // pred_check_branch
      %15 = sbr.rel (0) target = $region9
    $region8: #{tpu_custom_call.1} parent=1 // pred_region
      _
    $region9: #{tpu_custom_call.1} parent=1 // pred_fallthru
      _
    // Predicated region
    $region10: #{tpu_custom_call.1} parent=1 // pred_check
      _
    $region11: #{tpu_custom_call.1} parent=1 // pred_check_branch
      %17 = sbr.rel (0) target = $region13
    $region12: #{tpu_custom_call.1} parent=1 // pred_region
      _
    $region13: #{tpu_custom_call.1} parent=1 // pred_fallthru
      _
    // Predicated region
    $region14: #{tpu_custom_call.1} parent=1 // pred_check
      _
    $region15: #{tpu_custom_call.1} parent=1 // pred_check_branch
      %19 = sbr.rel (0) target = $region17
    $region16: #{tpu_custom_call.1} parent=1 // pred_region
      _
    $region17: #{tpu_custom_call.1} parent=1 // pred_fallthru
      _
    // Predicated region
    $region18: #{tpu_custom_call.1} parent=1 // pred_check
      _
    $region19: #{tpu_custom_call.1} parent=1 // pred_check_branch
      %21 = sbr.rel (0) target = $region21
    $region20: #{tpu_custom_call.1} parent=1 // pred_region
      _
    $region21: #{tpu_custom_call.1} parent=1 // pred_fallthru
      _
    // Predicated region
    $region22: #{tpu_custom_call.1} parent=1 // pred_check
      _
    $region23: #{tpu_custom_call.1} parent=1 // pred_check_branch
      %23 = sbr.rel (0) target = $region25
    $region24: #{tpu_custom_call.1} parent=1 // pred_region
      _
    $region25: #{tpu_custom_call.1} parent=1 // pred_fallthru
      _
    %v24 = vld [vmem:[%s0] sm:$0x77]
    %v25 = vld [vmem:[%s1] sm:$0xff]
    %v26 = vld [vmem:[%s1 + $0x8] sm:$0xff]
    %v27 = vld [vmem:[%s1 + $0x10] sm:$0xff]
    %v28 = vld [vmem:[%s1 + $0x18] sm:$0xff]
    %30 = vset.pattern.permute.xlu0 0
    %31 = vperm.xlu0 %30, %v25
    %v32 = vpop.permute.xlu0 %31
    %35 = vset.pattern.permute.xlu0 0
    %36 = vperm.xlu0 %35, %v26
    %v37 = vpop.permute.xlu0 %36
    %40 = vset.pattern.permute.xlu0 0
    %41 = vperm.xlu0 %40, %v27
    %v42 = vpop.permute.xlu0 %41
    %45 = vset.pattern.permute.xlu0 0
    %46 = vperm.xlu0 %45, %v28
    %v47 = vpop.permute.xlu0 %46
    %v50 = vlaneseq
    %v51 = vshrl.u32 %v50, 7
    %v52 = vsub.s32 0, %v51
    %v53 = vrot.slane %v24, %v52
    %v54 = vlaneseq
    %v55 = vshrl.u32 %v54, 7
    %v56 = vsub.s32 4, %v55
    %v57 = vrot.slane %v24, %v56
    %v60 = vlaneseq
    %v61 = vshrl.u32 %v60, 7
    %v62 = vsub.s32 0, %v61
    %v63 = vrot.slane %v53, %v62
    %v64 = vlaneseq
    %v65 = vshrl.u32 %v64, 7
    %v66 = vsub.s32 0, %v65
    %v67 = vrot.slane %v57, %v66
    %v68 = vmul.f32 %v32, %v63
    %v69 = vmul.f32 %v32, %v67
    %v70 = vmul.f32 %v37, %v63
    %v71 = vmul.f32 %v37, %v67
    %v72 = vmul.f32 %v42, %v63
    %v73 = vmul.f32 %v42, %v67
    %v74 = vmul.f32 %v47, %v63
    %v75 = vmul.f32 %v47, %v67
    %76 = vset.pattern.permute.xlu0 1
    %77 = vperm.xlu0 %76, %v25
    %v78 = vpop.permute.xlu0 %77
    %80 = vset.pattern.permute.xlu0 1
    %81 = vperm.xlu0 %80, %v26
    %v82 = vpop.permute.xlu0 %81
    %84 = vset.pattern.permute.xlu0 1
    %85 = vperm.xlu0 %84, %v27
    %v86 = vpop.permute.xlu0 %85
    %88 = vset.pattern.permute.xlu0 1
    %89 = vperm.xlu0 %88, %v28
    %v90 = vpop.permute.xlu0 %89
    %v92 = vlaneseq
    %v93 = vshrl.u32 %v92, 7
    %v94 = vsub.s32 1, %v93
    %v95 = vrot.slane %v24, %v94
    %v96 = vlaneseq
    %v97 = vshrl.u32 %v96, 7
    %v98 = vsub.s32 5, %v97
    %v99 = vrot.slane %v24, %v98
    %v102 = vlaneseq
    %v103 = vshrl.u32 %v102, 7
    %v104 = vsub.s32 1, %v103
    %v105 = vrot.slane %v95, %v104
    %v106 = vlaneseq
    %v107 = vshrl.u32 %v106, 7
    %v108 = vsub.s32 1, %v107
    %v109 = vrot.slane %v99, %v108
    %v110 = vmul.f32 %v78, %v105
    %v111 = vmul.f32 %v78, %v109
    %v112 = vmul.f32 %v82, %v105
    %v113 = vmul.f32 %v82, %v109
    %v114 = vmul.f32 %v86, %v105
    %v115 = vmul.f32 %v86, %v109
    %v116 = vmul.f32 %v90, %v105
    %v117 = vmul.f32 %v90, %v109
    %v118 = vadd.f32 %v68, %v110
    %v119 = vadd.f32 %v69, %v111
    %v120 = vadd.f32 %v70, %v112
    %v121 = vadd.f32 %v71, %v113
    %v122 = vadd.f32 %v72, %v114
    %v123 = vadd.f32 %v73, %v115
    %v124 = vadd.f32 %v74, %v116
    %v125 = vadd.f32 %v75, %v117
    %126 = vset.pattern.permute.xlu0 2
    %127 = vperm.xlu0 %126, %v25
    %v128 = vpop.permute.xlu0 %127
    %130 = vset.pattern.permute.xlu0 2
    %131 = vperm.xlu0 %130, %v26
    %v132 = vpop.permute.xlu0 %131
    %134 = vset.pattern.permute.xlu0 2
    %135 = vperm.xlu0 %134, %v27
    %v136 = vpop.permute.xlu0 %135
    %138 = vset.pattern.permute.xlu0 2
    %139 = vperm.xlu0 %138, %v28
    %v140 = vpop.permute.xlu0 %139
    %v142 = vlaneseq
    %v143 = vshrl.u32 %v142, 7
    %v144 = vsub.s32 2, %v143
    %v145 = vrot.slane %v24, %v144
    %v146 = vlaneseq
    %v147 = vshrl.u32 %v146, 7
    %v148 = vsub.s32 6, %v147
    %v149 = vrot.slane %v24, %v148
    %v152 = vlaneseq
    %v153 = vshrl.u32 %v152, 7
    %v154 = vsub.s32 2, %v153
    %v155 = vrot.slane %v145, %v154
    %v156 = vlaneseq
    %v157 = vshrl.u32 %v156, 7
    %v158 = vsub.s32 2, %v157
    %v159 = vrot.slane %v149, %v158
    %v160 = vmul.f32 %v128, %v155
    %v161 = vmul.f32 %v128, %v159
    %v162 = vmul.f32 %v132, %v155
    %v163 = vmul.f32 %v132, %v159
    %v164 = vmul.f32 %v136, %v155
    %v165 = vmul.f32 %v136, %v159
    %v166 = vmul.f32 %v140, %v155
    %v167 = vmul.f32 %v140, %v159
    %v168 = vadd.f32 %v118, %v160
    %v169 = vadd.f32 %v119, %v161
    %v170 = vadd.f32 %v120, %v162
    %v171 = vadd.f32 %v121, %v163
    %v172 = vadd.f32 %v122, %v164
    %v173 = vadd.f32 %v123, %v165
    %v174 = vadd.f32 %v124, %v166
    %v175 = vadd.f32 %v125, %v167
    %v176 = vld [vmem:[%s2] sm:$0xff]
    %v177 = vld [vmem:[%s2 + $0x8] sm:$0xff]
    %v178 = vld [vmem:[%s2 + $0x10] sm:$0xff]
    %v179 = vld [vmem:[%s2 + $0x18] sm:$0xff]
    %181 = vset.pattern.permute.xlu0 0
    %182 = vperm.xlu0 %181, %v176
    %v183 = vpop.permute.xlu0 %182
    %186 = vset.pattern.permute.xlu0 0
    %187 = vperm.xlu0 %186, %v177
    %v188 = vpop.permute.xlu0 %187
    %191 = vset.pattern.permute.xlu0 0
    %192 = vperm.xlu0 %191, %v178
    %v193 = vpop.permute.xlu0 %192
    %196 = vset.pattern.permute.xlu0 0
    %197 = vperm.xlu0 %196, %v179
    %v198 = vpop.permute.xlu0 %197
    %v200 = vadd.f32 %v168, %v183
    %v201 = vadd.f32 %v169, %v183
    %v202 = vadd.f32 %v170, %v188
    %v203 = vadd.f32 %v171, %v188
    %v204 = vadd.f32 %v172, %v193
    %v205 = vadd.f32 %v173, %v193
    %v206 = vadd.f32 %v174, %v198
    %v207 = vadd.f32 %v175, %v198
    %v208 = vmax.f32 %v200, 0.0
    %v209 = vmax.f32 %v201, 0.0
    %v210 = vmax.f32 %v202, 0.0
    %v211 = vmax.f32 %v203, 0.0
    %v212 = vmax.f32 %v204, 0.0
    %v213 = vmax.f32 %v205, 0.0
    %v214 = vmax.f32 %v206, 0.0
    %v215 = vmax.f32 %v207, 0.0
    %v216 = vadd.f32 %v208, %v209
    %217 = vadd.xlane.f32.xlu0 %v216
    %v218 = vpop.xlane.xlu0 %217
    %v219 = vadd.f32 %v210, %v211
    %220 = vadd.xlane.f32.xlu0 %v219
    %v221 = vpop.xlane.xlu0 %220
    %v222 = vadd.f32 %v212, %v213
    %223 = vadd.xlane.f32.xlu0 %v222
    %v224 = vpop.xlane.xlu0 %223
    %v225 = vadd.f32 %v214, %v215
    %226 = vadd.xlane.f32.xlu0 %v225
    %v227 = vpop.xlane.xlu0 %226
    %v228 = vrcp.pop 256.0
    %v229 = vmul.f32 %v218, %v228
    %v230 = vmul.f32 %v221, %v228
    %v231 = vmul.f32 %v224, %v228
    %v232 = vmul.f32 %v227, %v228
    %v233 = vld [vmem:[%s3] sm:$0xff]
    %v234 = vld [vmem:[%s3 + $0x8] sm:$0xff]
    %v235 = vld [vmem:[%s3 + $0x10] sm:$0xff]
    %v236 = vld [vmem:[%s3 + $0x18] sm:$0xff]
    %v237 = vmul.f32 %v229, %v233
    %v238 = vmul.f32 %v230, %v234
    %v239 = vmul.f32 %v231, %v235
    %v240 = vmul.f32 %v232, %v236
    %v241 = vadd.f32 %v237, %v238
    %v242 = vadd.f32 %v241, %v239
    %v243 = vadd.f32 %v242, %v240
    %v244 = vrot.slane %v243, 4
    %v245 = vadd.f32 %v243, %v244
    %v246 = vrot.slane %v245, 2
    %v247 = vadd.f32 %v245, %v246
    %v248 = vrot.slane %v247, 1
    %v249 = vadd.f32 %v247, %v248
    %v250 = vld [vmem:[%s4] sm:$0x1]
    %v251 = vadd.f32 %v249, %v250
    %v252 = vmax.f32 %v251, 0.0
    %v253 = vld [vmem:[%s5] sm:$0x1]
    %vm254 = vcmp.ge.f32.partialorder %v253, 0.1
    %v255 = vmul.f32 %v252, 1.1111112
    %v256 = vsel %vm254, %v255, 0.0
    %257 = vst [vmem:[#allocation2] sm:$0x1] %v256
    // Predicated region
    $region26: #{tpu_custom_call.1} parent=1 // pred_check
      _
    $region27: #{tpu_custom_call.1} parent=1 // pred_check_branch
      %259 = sbr.rel (0) target = $region29
    $region28: #{tpu_custom_call.1} parent=1 // pred_region
      %s261 = ssub.s32 16, 16
      %262 = vsyncadd [#allocation3], %s261
      %s264 = sshll.u32 [#allocation2], 4
      %s265 = int_to_ptr.vmem [resolvable:$true] %s264
      %267 = dma.vmem_to_hbm [thread:$0]  %s265, 16, %s6, [#allocation3]
    $region29: #{tpu_custom_call.1} parent=1 // pred_fallthru
      _
    // Predicated region
    $region30: #{tpu_custom_call.1} parent=1 // pred_check
      _
    $region31: #{tpu_custom_call.1} parent=1 // pred_check_branch
      %269 = sbr.rel (0) target = $region33
    $region32: #{tpu_custom_call.1} parent=1 // pred_region
      %270 = dma.done [#allocation3], 16
    $region33: #{tpu_custom_call.1} parent=1 // pred_fallthru
      _
    %271 = vsyncpa [#allocation3], 1

</llo_original>
